<compile_context>
chip_gen: v5e
topology: v5e:2x2
jax: 0.10.0
libtpu: 0.0.40
codegen_flags: <defaults>
</compile_context>

<pallas_src>
import functools

import jax
import jax.numpy as jnp
from jax.experimental import pallas as pl
from jax.experimental.pallas import tpu as pltpu


# ---------------------------------------------------------------------------
# Kernel body
# ---------------------------------------------------------------------------
def _iaff_kernel(x_ref, r_ref,
                 w1_ref, b1_ref, w2_ref, b2_ref,      # local_att  (BN folded)
                 w3_ref, b3_ref, w4_ref, b4_ref,      # global_att (BN folded)
                 w5_ref, b5_ref, w6_ref, b6_ref,      # local_att2 (BN folded)
                 o_ref, *, matmul_dtype, channels_last):
    if channels_last:
        x3 = x_ref[...]                               # (Bt, L, C)
        r3 = r_ref[...]
    else:
        # NCL tile -> NLC in VMEM (XLU transpose; avoids extra HBM round trips)
        x3 = jnp.transpose(x_ref[...], (0, 2, 1))     # (Bt, C, L) -> (Bt, L, C)
        r3 = jnp.transpose(r_ref[...], (0, 2, 1))
    x3 = x3.astype(jnp.float32)
    r3 = r3.astype(jnp.float32)
    Bt, L, C = x3.shape

    w1, b1 = w1_ref[...], b1_ref[...]
    w2, b2 = w2_ref[...], b2_ref[...]
    w3, b3 = w3_ref[...], b3_ref[...]
    w4, b4 = w4_ref[...], b4_ref[...]
    w5, b5 = w5_ref[...], b5_ref[...]
    w6, b6 = w6_ref[...], b6_ref[...]

    def bottleneck(inp2d, wa, ba, wb, bb):
        # conv1x1 (+folded BN) -> relu -> conv1x1 (+folded BN).
        # Weights are already in matmul_dtype (pre-cast on host); only the
        # activations are cast.  Accumulation & elementwise stay f32.
        h = jnp.dot(inp2d.astype(matmul_dtype), wa,
                    preferred_element_type=jnp.float32) + ba
        h = jnp.maximum(h, 0.0)
        return jnp.dot(h.astype(matmul_dtype), wb,
                       preferred_element_type=jnp.float32) + bb

    d = x3 - r3                                       # hoisted; reused by both lerps

    # ---- stage 1 ----
    xa3 = x3 + r3                                     # (Bt, L, C)
    xl = bottleneck(xa3.reshape(Bt * L, C), w1, b1, w2, b2)     # local attention
    xg = bottleneck(jnp.mean(xa3, axis=1), w3, b3, w4, b4)      # global attention, (Bt, C)
    wei = jax.nn.sigmoid(xl.reshape(Bt, L, C) + xg[:, None, :])
    xi3 = r3 + d * wei                                # == x*wei + res*(1-wei)

    # ---- stage 2 ----
    xl2 = bottleneck(xi3.reshape(Bt * L, C), w5, b5, w6, b6)    # local_att2
    xg2 = bottleneck(jnp.mean(xi3, axis=1), w3, b3, w4, b4)     # global_att reused (as in PyTorch)
    wei2 = jax.nn.sigmoid(xl2.reshape(Bt, L, C) + xg2[:, None, :])
    out = r3 + d * wei2

    if channels_last:
        o_ref[...] = out.astype(o_ref.dtype)
    else:
        o_ref[...] = jnp.transpose(out, (0, 2, 1)).astype(o_ref.dtype)


# ---------------------------------------------------------------------------
# Wrapper
# ---------------------------------------------------------------------------
def _pick_batch_tile(B, L, target_rows=4096, min_steps=8):
    """Largest divisor of B giving tiles of <= target_rows rows, preferring
    enough grid steps for pipelining / v7x megacore sharding."""
    divisors = [d for d in range(1, B + 1) if B % d == 0]
    fitting = [d for d in divisors if d * L <= target_rows] or [1]
    enough = [d for d in fitting if B // d >= min(min_steps, B)]
    pool = enough if enough else fitting
    return max(pool)


def iaff_pallas(x, res, folded_params, *, batch_tile=None,
                matmul_dtype=jnp.bfloat16, out_dtype=None,
                channels_last=True, buffer_count=2, vmem_limit_bytes=None):
    """iAFF forward.

    x, res: (B, L, C) if channels_last else (B, C, L).  dtype f32 or bf16.
    folded_params: 12 arrays (w,b)*6 with BN folded (see make_iaff_params).
    """
    if channels_last:
        B, L, C = x.shape
    else:
        B, C, L = x.shape
    assert C % 128 == 0, "C must be a multiple of 128 (lane width) for the free (B*L, C) collapse"

    out_dtype = x.dtype if out_dtype is None else out_dtype

    if batch_tile is None:
        Bt = _pick_batch_tile(B, L)
    else:
        Bt = int(batch_tile)
        assert B % Bt == 0, "batch_tile must divide B (avoid OOB reads on last block)"
    grid = (B // Bt,)

    # Pre-cast the six MXU weight operands once on the host; biases stay f32.
    params = list(folded_params)
    for idx in range(0, 12, 2):
        params[idx] = params[idx].astype(matmul_dtype)

    blk = (Bt, L, C) if channels_last else (Bt, C, L)
    if buffer_count == 2:
        data_spec = pl.BlockSpec(blk, lambda i: (i, 0, 0))
    else:
        data_spec = pl.BlockSpec(blk, lambda i: (i, 0, 0),
                                 pipeline_mode=pl.Buffered(buffer_count))

    def full_spec(arr):
        nd = arr.ndim
        # constant index_map -> weights stay VMEM-resident across grid steps
        return pl.BlockSpec(arr.shape, lambda i, _nd=nd: (0,) * _nd)

    in_sz = jnp.dtype(x.dtype).itemsize
    out_sz = jnp.dtype(out_dtype).itemsize
    weight_bytes = sum(int(p.size) * jnp.dtype(p.dtype).itemsize for p in params)

    if vmem_limit_bytes is None:
        tile_f32 = Bt * L * C * 4
        io = Bt * L * C * (2 * in_sz + out_sz) * buffer_count
        need = io + 8 * tile_f32 + 2 * weight_bytes + (2 << 20)
        # raise v5e's 16 MiB scoped default; stay well under v7x's 64 MiB physical
        vmem_limit_bytes = int(min(max(need, 32 << 20), 48 << 20))

    Ci = params[0].shape[1]
    flops = 8 * B * L * C * Ci + 8 * B * C * Ci + 12 * B * L * C
    transcendentals = 2 * B * L * C
    bytes_accessed = B * L * C * (2 * in_sz + out_sz) + weight_bytes
    cost = pl.CostEstimate(flops=flops, transcendentals=transcendentals,
                           bytes_accessed=bytes_accessed)

    kernel = functools.partial(_iaff_kernel, matmul_dtype=matmul_dtype,
                               channels_last=channels_last)

    out_shape = (B, L, C) if channels_last else (B, C, L)
    return pl.pallas_call(
        kernel,
        out_shape=jax.ShapeDtypeStruct(out_shape, out_dtype),
        grid=grid,
        in_specs=[data_spec, data_spec] + [full_spec(p) for p in params],
        out_specs=data_spec,
        compiler_params=pltpu.CompilerParams(
            dimension_semantics=("parallel",),
            vmem_limit_bytes=vmem_limit_bytes),
        cost_estimate=cost,
    )(x, res, *params)


def iaff_pallas_ncl(x_ncl, res_ncl, folded_params, **kw):
    """PyTorch-convention (B, C, L) entrypoint. The layout transpose happens
    inside the kernel (VMEM/XLU), not as extra XLA HBM round trips."""
    kw.setdefault("channels_last", False)
    return iaff_pallas(x_ncl, res_ncl, folded_params, **kw)


# ---------------------------------------------------------------------------
# Parameter construction (deterministic) and BN folding (plain-JAX glue).
# ---------------------------------------------------------------------------
def _make_conv_bn(key, c_in, c_out):
    """Conv1d(k=1, bias=True) + BatchNorm1d params (eval mode)."""
    ks = jax.random.split(key, 6)
    w = jax.random.normal(ks[0], (c_out, c_in), jnp.float32) * 0.1
    b = jax.random.normal(ks[1], (c_out,), jnp.float32) * 0.1
    gamma = 1.0 + 0.1 * jax.random.normal(ks[2], (c_out,), jnp.float32)
    beta = 0.1 * jax.random.normal(ks[3], (c_out,), jnp.float32)
    mean = 0.1 * jax.random.normal(ks[4], (c_out,), jnp.float32)
    var = jnp.abs(jax.random.normal(ks[5], (c_out,), jnp.float32)) + 0.5
    return w, b, gamma, beta, mean, var


def _fold_conv_bn(w, b, gamma, beta, mean, var, eps=1e-5):
    """Fold eval-mode BN into a 1x1 conv; return (C_in, C_out) weight + (1, C_out) bias."""
    scale = gamma / jnp.sqrt(var + eps)
    w_f = (w * scale[:, None]).T
    b_f = ((b - mean) * scale + beta)[None, :]
    return w_f.astype(jnp.float32), b_f.astype(jnp.float32)


def make_iaff_params(key, channels, r):
    inter = channels // r
    keys = jax.random.split(key, 6)
    p1 = _fold_conv_bn(*_make_conv_bn(keys[0], channels, inter))   # local_att
    p2 = _fold_conv_bn(*_make_conv_bn(keys[1], inter, channels))
    p3 = _fold_conv_bn(*_make_conv_bn(keys[2], channels, inter))   # global_att
    p4 = _fold_conv_bn(*_make_conv_bn(keys[3], inter, channels))
    p5 = _fold_conv_bn(*_make_conv_bn(keys[4], channels, inter))   # local_att2
    p6 = _fold_conv_bn(*_make_conv_bn(keys[5], inter, channels))
    # global_att2 exists in __init__ but is never used in forward (bug in the
    # original module); intentionally not materialized.
    return [p1[0], p1[1], p2[0], p2[1],
            p3[0], p3[1], p4[0], p4[1],
            p5[0], p5[1], p6[0], p6[1]]


# Pure-JAX reference (same math) for a correctness check.
def iaff_reference(x_nlc, res_nlc, fp):
    (w1, b1, w2, b2, w3, b3, w4, b4, w5, b5, w6, b6) = fp

    def bottleneck(inp, wa, ba, wb, bb):
        h = jnp.maximum(inp @ wa + ba, 0.0)
        return h @ wb + bb

    xa = x_nlc + res_nlc
    xl = bottleneck(xa, w1, b1, w2, b2)
    xg = bottleneck(jnp.mean(xa, axis=1, keepdims=True), w3, b3, w4, b4)
    wei = jax.nn.sigmoid(xl + xg)
    xi = x_nlc * wei + res_nlc * (1.0 - wei)
    xl2 = bottleneck(xi, w5, b5, w6, b6)
    xg2 = bottleneck(jnp.mean(xi, axis=1, keepdims=True), w3, b3, w4, b4)
    wei2 = jax.nn.sigmoid(xl2 + xg2)
    return x_nlc * wei2 + res_nlc * (1.0 - wei2)


if __name__ == "__main__":
    B, C, L, r = 2, 128, 16, 4   # channels=128, inter_channels=32, seq length 16

    key = jax.random.PRNGKey(0)
    k_x, k_r, k_p = jax.random.split(key, 3)

    # PyTorch-convention inputs: NCL
    x_ncl = jax.random.normal(k_x, (B, C, L), jnp.float32)
    res_ncl = jax.random.normal(k_r, (B, C, L), jnp.float32)
    params = make_iaff_params(k_p, C, r)

    x_nlc = jnp.transpose(x_ncl, (0, 2, 1))
    res_nlc = jnp.transpose(res_ncl, (0, 2, 1))
    ref_nlc = iaff_reference(x_nlc, res_nlc, params)

    # 1) NCL path (in-kernel transpose), f32 MXU -> exact-math tight check.
    out_ncl = iaff_pallas_ncl(x_ncl, res_ncl, params, matmul_dtype=jnp.float32)
    jax.block_until_ready(out_ncl)
    assert out_ncl.shape == (B, C, L)
    assert jnp.allclose(out_ncl, jnp.transpose(ref_nlc, (0, 2, 1)),
                        atol=1e-5, rtol=1e-5), "NCL/f32 mismatch vs reference"

    # 2) Native NLC path with defaults (bf16 HBM I/O + bf16 MXU, f32 accum /
    #    elementwise) -> loose sanity check against the f32 reference.
    out_bf16 = iaff_pallas(x_nlc.astype(jnp.bfloat16),
                           res_nlc.astype(jnp.bfloat16), params)
    jax.block_until_ready(out_bf16)
    assert out_bf16.shape == (B, L, C) and out_bf16.dtype == jnp.bfloat16
    diff = jnp.max(jnp.abs(out_bf16.astype(jnp.float32) - ref_nlc))
    assert bool(jnp.isfinite(diff)) and float(diff) < 0.25, "bf16 path diverged"

    print("KERNEL_OK")
</pallas_src>

<mosaic_0001>
module attributes {stable_mosaic.version = 11 : i64} {
  func.func @_iaff_kernel(%arg0: i32, %arg1: memref<1x128x16xf32, #tpu.memory_space<vmem>>, %arg2: memref<1x128x16xf32, #tpu.memory_space<vmem>>, %arg3: memref<128x32xf32, #tpu.memory_space<vmem>>, %arg4: memref<1x32xf32, #tpu.memory_space<vmem>>, %arg5: memref<32x128xf32, #tpu.memory_space<vmem>>, %arg6: memref<1x128xf32, #tpu.memory_space<vmem>>, %arg7: memref<128x32xf32, #tpu.memory_space<vmem>>, %arg8: memref<1x32xf32, #tpu.memory_space<vmem>>, %arg9: memref<32x128xf32, #tpu.memory_space<vmem>>, %arg10: memref<1x128xf32, #tpu.memory_space<vmem>>, %arg11: memref<128x32xf32, #tpu.memory_space<vmem>>, %arg12: memref<1x32xf32, #tpu.memory_space<vmem>>, %arg13: memref<32x128xf32, #tpu.memory_space<vmem>>, %arg14: memref<1x128xf32, #tpu.memory_space<vmem>>, %arg15: memref<1x128x16xf32, #tpu.memory_space<vmem>>) attributes {dimension_semantics = [#tpu.dimension_semantics<parallel>], iteration_bounds = array<i64: 2>, scalar_prefetch = 0 : i64, scratch_operands = 0 : i64, tpu.core_type = #tpu.core_type<tc>, window_params = [{transform_indices = @transform_0, window_bounds = array<i64: 1, 128, 16>}, {transform_indices = @transform_1, window_bounds = array<i64: 1, 128, 16>}, {pipeline_mode = #tpu.pipeline_mode<synchronous>, transform_indices = @transform_2, window_bounds = array<i64: 128, 32>}, {pipeline_mode = #tpu.pipeline_mode<synchronous>, transform_indices = @transform_3, window_bounds = array<i64: 1, 32>}, {pipeline_mode = #tpu.pipeline_mode<synchronous>, transform_indices = @transform_4, window_bounds = array<i64: 32, 128>}, {pipeline_mode = #tpu.pipeline_mode<synchronous>, transform_indices = @transform_5, window_bounds = array<i64: 1, 128>}, {pipeline_mode = #tpu.pipeline_mode<synchronous>, transform_indices = @transform_6, window_bounds = array<i64: 128, 32>}, {pipeline_mode = #tpu.pipeline_mode<synchronous>, transform_indices = @transform_7, window_bounds = array<i64: 1, 32>}, {pipeline_mode = #tpu.pipeline_mode<synchronous>, transform_indices = @transform_8, window_bounds = array<i64: 32, 128>}, {pipeline_mode = #tpu.pipeline_mode<synchronous>, transform_indices = @transform_9, window_bounds = array<i64: 1, 128>}, {pipeline_mode = #tpu.pipeline_mode<synchronous>, transform_indices = @transform_10, window_bounds = array<i64: 128, 32>}, {pipeline_mode = #tpu.pipeline_mode<synchronous>, transform_indices = @transform_11, window_bounds = array<i64: 1, 32>}, {pipeline_mode = #tpu.pipeline_mode<synchronous>, transform_indices = @transform_12, window_bounds = array<i64: 32, 128>}, {pipeline_mode = #tpu.pipeline_mode<synchronous>, transform_indices = @transform_13, window_bounds = array<i64: 1, 128>}, {transform_indices = @transform_14, window_bounds = array<i64: 1, 128, 16>}]} {
    %c0 = arith.constant 0 : index
    %c0_0 = arith.constant 0 : index
    %c0_1 = arith.constant 0 : index
    %0 = vector.load %arg1[%c0, %c0_0, %c0_1] : memref<1x128x16xf32, #tpu.memory_space<vmem>>, vector<1x128x16xf32>
    %1 = tpu.transpose %0, [0, 2, 1] : vector<1x128x16xf32> -> vector<1x16x128xf32>
    %c0_2 = arith.constant 0 : index
    %c0_3 = arith.constant 0 : index
    %c0_4 = arith.constant 0 : index
    %2 = vector.load %arg2[%c0_2, %c0_3, %c0_4] : memref<1x128x16xf32, #tpu.memory_space<vmem>>, vector<1x128x16xf32>
    %3 = tpu.transpose %2, [0, 2, 1] : vector<1x128x16xf32> -> vector<1x16x128xf32>
    %c0_5 = arith.constant 0 : index
    %c0_6 = arith.constant 0 : index
    %4 = vector.load %arg3[%c0_5, %c0_6] : memref<128x32xf32, #tpu.memory_space<vmem>>, vector<128x32xf32>
    %c0_7 = arith.constant 0 : index
    %c0_8 = arith.constant 0 : index
    %5 = vector.load %arg4[%c0_7, %c0_8] : memref<1x32xf32, #tpu.memory_space<vmem>>, vector<1x32xf32>
    %c0_9 = arith.constant 0 : index
    %c0_10 = arith.constant 0 : index
    %6 = vector.load %arg5[%c0_9, %c0_10] : memref<32x128xf32, #tpu.memory_space<vmem>>, vector<32x128xf32>
    %c0_11 = arith.constant 0 : index
    %c0_12 = arith.constant 0 : index
    %7 = vector.load %arg6[%c0_11, %c0_12] : memref<1x128xf32, #tpu.memory_space<vmem>>, vector<1x128xf32>
    %c0_13 = arith.constant 0 : index
    %c0_14 = arith.constant 0 : index
    %8 = vector.load %arg7[%c0_13, %c0_14] : memref<128x32xf32, #tpu.memory_space<vmem>>, vector<128x32xf32>
    %c0_15 = arith.constant 0 : index
    %c0_16 = arith.constant 0 : index
    %9 = vector.load %arg8[%c0_15, %c0_16] : memref<1x32xf32, #tpu.memory_space<vmem>>, vector<1x32xf32>
    %c0_17 = arith.constant 0 : index
    %c0_18 = arith.constant 0 : index
    %10 = vector.load %arg9[%c0_17, %c0_18] : memref<32x128xf32, #tpu.memory_space<vmem>>, vector<32x128xf32>
    %c0_19 = arith.constant 0 : index
    %c0_20 = arith.constant 0 : index
    %11 = vector.load %arg10[%c0_19, %c0_20] : memref<1x128xf32, #tpu.memory_space<vmem>>, vector<1x128xf32>
    %c0_21 = arith.constant 0 : index
    %c0_22 = arith.constant 0 : index
    %12 = vector.load %arg11[%c0_21, %c0_22] : memref<128x32xf32, #tpu.memory_space<vmem>>, vector<128x32xf32>
    %c0_23 = arith.constant 0 : index
    %c0_24 = arith.constant 0 : index
    %13 = vector.load %arg12[%c0_23, %c0_24] : memref<1x32xf32, #tpu.memory_space<vmem>>, vector<1x32xf32>
    %c0_25 = arith.constant 0 : index
    %c0_26 = arith.constant 0 : index
    %14 = vector.load %arg13[%c0_25, %c0_26] : memref<32x128xf32, #tpu.memory_space<vmem>>, vector<32x128xf32>
    %c0_27 = arith.constant 0 : index
    %c0_28 = arith.constant 0 : index
    %15 = vector.load %arg14[%c0_27, %c0_28] : memref<1x128xf32, #tpu.memory_space<vmem>>, vector<1x128xf32>
    %16 = arith.subf %1, %3 : vector<1x16x128xf32>
    %17 = arith.addf %1, %3 : vector<1x16x128xf32>
    %18 = vector.shape_cast %17 : vector<1x16x128xf32> to vector<16x128xf32>
    %cst = arith.constant dense<0.000000e+00> : vector<16x32xf32>
    %19 = tpu.matmul %18, %4, %cst {dimension_numbers = #tpu.dot_dimension_numbers<[1], [0], [0], [1], [0, 0, 1, 1], [], []>} : vector<16x128xf32>, vector<128x32xf32>, vector<16x32xf32> -> vector<16x32xf32>
    %20 = vector.broadcast %5 : vector<1x32xf32> to vector<16x32xf32>
    %21 = arith.addf %19, %20 : vector<16x32xf32>
    %cst_29 = arith.constant 0.000000e+00 : f32
    %22 = vector.broadcast %cst_29 : f32 to vector<16x32xf32>
    %23 = arith.maximumf %21, %22 : vector<16x32xf32>
    %cst_30 = arith.constant dense<0.000000e+00> : vector<16x128xf32>
    %24 = tpu.matmul %23, %6, %cst_30 {dimension_numbers = #tpu.dot_dimension_numbers<[1], [0], [0], [1], [0, 0, 1, 1], [], []>} : vector<16x32xf32>, vector<32x128xf32>, vector<16x128xf32> -> vector<16x128xf32>
    %25 = vector.broadcast %7 : vector<1x128xf32> to vector<16x128xf32>
    %26 = arith.addf %24, %25 : vector<16x128xf32>
    %cst_31 = arith.constant dense<0.000000e+00> : vector<1x128xf32>
    %27 = vector.multi_reduction <add>, %17, %cst_31 [1] : vector<1x16x128xf32> to vector<1x128xf32>
    %cst_32 = arith.constant 1.600000e+01 : f32
    %28 = vector.broadcast %cst_32 : f32 to vector<1x128xf32>
    %29 = arith.divf %27, %28 : vector<1x128xf32>
    %cst_33 = arith.constant dense<0.000000e+00> : vector<1x32xf32>
    %30 = tpu.matmul %29, %8, %cst_33 {dimension_numbers = #tpu.dot_dimension_numbers<[1], [0], [0], [1], [0, 0, 1, 1], [], []>} : vector<1x128xf32>, vector<128x32xf32>, vector<1x32xf32> -> vector<1x32xf32>
    %31 = arith.addf %30, %9 : vector<1x32xf32>
    %cst_34 = arith.constant 0.000000e+00 : f32
    %32 = vector.broadcast %cst_34 : f32 to vector<1x32xf32>
    %33 = arith.maximumf %31, %32 : vector<1x32xf32>
    %cst_35 = arith.constant dense<0.000000e+00> : vector<1x128xf32>
    %34 = tpu.matmul %33, %10, %cst_35 {dimension_numbers = #tpu.dot_dimension_numbers<[1], [0], [0], [1], [0, 0, 1, 1], [], []>} : vector<1x32xf32>, vector<32x128xf32>, vector<1x128xf32> -> vector<1x128xf32>
    %35 = arith.addf %34, %11 : vector<1x128xf32>
    %36 = vector.shape_cast %26 : vector<16x128xf32> to vector<1x16x128xf32>
    %37 = vector.shape_cast %35 : vector<1x128xf32> to vector<1x1x128xf32>
    %38 = vector.broadcast %37 : vector<1x1x128xf32> to vector<1x16x128xf32>
    %39 = arith.addf %36, %38 : vector<1x16x128xf32>
    %40 = arith.negf %39 : vector<1x16x128xf32>
    %41 = math.exp %40 : vector<1x16x128xf32>
    %cst_36 = arith.constant 1.000000e+00 : f32
    %42 = vector.broadcast %cst_36 : f32 to vector<1x16x128xf32>
    %43 = arith.addf %42, %41 : vector<1x16x128xf32>
    %44 = arith.divf %42, %43 : vector<1x16x128xf32>
    %45 = arith.mulf %16, %44 : vector<1x16x128xf32>
    %46 = arith.addf %3, %45 : vector<1x16x128xf32>
    %47 = vector.shape_cast %46 : vector<1x16x128xf32> to vector<16x128xf32>
    %cst_37 = arith.constant dense<0.000000e+00> : vector<16x32xf32>
    %48 = tpu.matmul %47, %12, %cst_37 {dimension_numbers = #tpu.dot_dimension_numbers<[1], [0], [0], [1], [0, 0, 1, 1], [], []>} : vector<16x128xf32>, vector<128x32xf32>, vector<16x32xf32> -> vector<16x32xf32>
    %49 = vector.broadcast %13 : vector<1x32xf32> to vector<16x32xf32>
    %50 = arith.addf %48, %49 : vector<16x32xf32>
    %cst_38 = arith.constant 0.000000e+00 : f32
    %51 = vector.broadcast %cst_38 : f32 to vector<16x32xf32>
    %52 = arith.maximumf %50, %51 : vector<16x32xf32>
    %cst_39 = arith.constant dense<0.000000e+00> : vector<16x128xf32>
    %53 = tpu.matmul %52, %14, %cst_39 {dimension_numbers = #tpu.dot_dimension_numbers<[1], [0], [0], [1], [0, 0, 1, 1], [], []>} : vector<16x32xf32>, vector<32x128xf32>, vector<16x128xf32> -> vector<16x128xf32>
    %54 = vector.broadcast %15 : vector<1x128xf32> to vector<16x128xf32>
    %55 = arith.addf %53, %54 : vector<16x128xf32>
    %cst_40 = arith.constant dense<0.000000e+00> : vector<1x128xf32>
    %56 = vector.multi_reduction <add>, %46, %cst_40 [1] : vector<1x16x128xf32> to vector<1x128xf32>
    %cst_41 = arith.constant 1.600000e+01 : f32
    %57 = vector.broadcast %cst_41 : f32 to vector<1x128xf32>
    %58 = arith.divf %56, %57 : vector<1x128xf32>
    %cst_42 = arith.constant dense<0.000000e+00> : vector<1x32xf32>
    %59 = tpu.matmul %58, %8, %cst_42 {dimension_numbers = #tpu.dot_dimension_numbers<[1], [0], [0], [1], [0, 0, 1, 1], [], []>} : vector<1x128xf32>, vector<128x32xf32>, vector<1x32xf32> -> vector<1x32xf32>
    %60 = arith.addf %59, %9 : vector<1x32xf32>
    %cst_43 = arith.constant 0.000000e+00 : f32
    %61 = vector.broadcast %cst_43 : f32 to vector<1x32xf32>
    %62 = arith.maximumf %60, %61 : vector<1x32xf32>
    %cst_44 = arith.constant dense<0.000000e+00> : vector<1x128xf32>
    %63 = tpu.matmul %62, %10, %cst_44 {dimension_numbers = #tpu.dot_dimension_numbers<[1], [0], [0], [1], [0, 0, 1, 1], [], []>} : vector<1x32xf32>, vector<32x128xf32>, vector<1x128xf32> -> vector<1x128xf32>
    %64 = arith.addf %63, %11 : vector<1x128xf32>
    %65 = vector.shape_cast %55 : vector<16x128xf32> to vector<1x16x128xf32>
    %66 = vector.shape_cast %64 : vector<1x128xf32> to vector<1x1x128xf32>
    %67 = vector.broadcast %66 : vector<1x1x128xf32> to vector<1x16x128xf32>
    %68 = arith.addf %65, %67 : vector<1x16x128xf32>
    %69 = arith.negf %68 : vector<1x16x128xf32>
    %70 = math.exp %69 : vector<1x16x128xf32>
    %cst_45 = arith.constant 1.000000e+00 : f32
    %71 = vector.broadcast %cst_45 : f32 to vector<1x16x128xf32>
    %72 = arith.addf %71, %70 : vector<1x16x128xf32>
    %73 = arith.divf %71, %72 : vector<1x16x128xf32>
    %74 = arith.mulf %16, %73 : vector<1x16x128xf32>
    %75 = arith.addf %3, %74 : vector<1x16x128xf32>
    %76 = tpu.transpose %75, [0, 2, 1] : vector<1x16x128xf32> -> vector<1x128x16xf32>
    %c0_46 = arith.constant 0 : index
    %c0_47 = arith.constant 0 : index
    %c0_48 = arith.constant 0 : index
    %77 = vector.load %arg15[%c0_46, %c0_47, %c0_48] : memref<1x128x16xf32, #tpu.memory_space<vmem>>, vector<1x128x16xf32>
    tpu.vector_store %arg15[%c0_46, %c0_47, %c0_48], %76 {strides = array<i32>} : memref<1x128x16xf32, #tpu.memory_space<vmem>>, vector<1x128x16xf32>,
    return
  }
  func.func @transform_0(%arg0: i32) -> (i32, i32, i32) {
    %c0_i32 = arith.constant 0 : i32
    %c0_i32_0 = arith.constant 0 : i32
    %c0_i32_1 = arith.constant 0 : i32
    return %arg0, %c0_i32, %c0_i32_0 : i32, i32, i32
  }
  func.func @transform_1(%arg0: i32) -> (i32, i32, i32) {
    %c0_i32 = arith.constant 0 : i32
    %c0_i32_0 = arith.constant 0 : i32
    %c0_i32_1 = arith.constant 0 : i32
    return %arg0, %c0_i32, %c0_i32_0 : i32, i32, i32
  }
  func.func @transform_2(%arg0: i32) -> (i32, i32) {
    %c0_i32 = arith.constant 0 : i32
    %c0_i32_0 = arith.constant 0 : i32
    %c0_i32_1 = arith.constant 0 : i32
    return %c0_i32, %c0_i32_0 : i32, i32
  }
  func.func @transform_3(%arg0: i32) -> (i32, i32) {
    %c0_i32 = arith.constant 0 : i32
    %c0_i32_0 = arith.constant 0 : i32
    %c0_i32_1 = arith.constant 0 : i32
    return %c0_i32, %c0_i32_0 : i32, i32
  }
  func.func @transform_4(%arg0: i32) -> (i32, i32) {
    %c0_i32 = arith.constant 0 : i32
    %c0_i32_0 = arith.constant 0 : i32
    %c0_i32_1 = arith.constant 0 : i32
    return %c0_i32, %c0_i32_0 : i32, i32
  }
  func.func @transform_5(%arg0: i32) -> (i32, i32) {
    %c0_i32 = arith.constant 0 : i32
    %c0_i32_0 = arith.constant 0 : i32
    %c0_i32_1 = arith.constant 0 : i32
    return %c0_i32, %c0_i32_0 : i32, i32
  }
  func.func @transform_6(%arg0: i32) -> (i32, i32) {
    %c0_i32 = arith.constant 0 : i32
    %c0_i32_0 = arith.constant 0 : i32
    %c0_i32_1 = arith.constant 0 : i32
    return %c0_i32, %c0_i32_0 : i32, i32
  }
  func.func @transform_7(%arg0: i32) -> (i32, i32) {
    %c0_i32 = arith.constant 0 : i32
    %c0_i32_0 = arith.constant 0 : i32
    %c0_i32_1 = arith.constant 0 : i32
    return %c0_i32, %c0_i32_0 : i32, i32
  }
  func.func @transform_8(%arg0: i32) -> (i32, i32) {
    %c0_i32 = arith.constant 0 : i32
    %c0_i32_0 = arith.constant 0 : i32
    %c0_i32_1 = arith.constant 0 : i32
    return %c0_i32, %c0_i32_0 : i32, i32
  }
  func.func @transform_9(%arg0: i32) -> (i32, i32) {
    %c0_i32 = arith.constant 0 : i32
    %c0_i32_0 = arith.constant 0 : i32
    %c0_i32_1 = arith.constant 0 : i32
    return %c0_i32, %c0_i32_0 : i32, i32
  }
  func.func @transform_10(%arg0: i32) -> (i32, i32) {
    %c0_i32 = arith.constant 0 : i32
    %c0_i32_0 = arith.constant 0 : i32
    %c0_i32_1 = arith.constant 0 : i32
    return %c0_i32, %c0_i32_0 : i32, i32
  }
  func.func @transform_11(%arg0: i32) -> (i32, i32) {
    %c0_i32 = arith.constant 0 : i32
    %c0_i32_0 = arith.constant 0 : i32
    %c0_i32_1 = arith.constant 0 : i32
    return %c0_i32, %c0_i32_0 : i32, i32
  }
  func.func @transform_12(%arg0: i32) -> (i32, i32) {
    %c0_i32 = arith.constant 0 : i32
    %c0_i32_0 = arith.constant 0 : i32
    %c0_i32_1 = arith.constant 0 : i32
    return %c0_i32, %c0_i32_0 : i32, i32
  }
  func.func @transform_13(%arg0: i32) -> (i32, i32) {
    %c0_i32 = arith.constant 0 : i32
    %c0_i32_0 = arith.constant 0 : i32
    %c0_i32_1 = arith.constant 0 : i32
    return %c0_i32, %c0_i32_0 : i32, i32
  }
  func.func @transform_14(%arg0: i32) -> (i32, i32, i32) {
    %c0_i32 = arith.constant 0 : i32
    %c0_i32_0 = arith.constant 0 : i32
    %c0_i32_1 = arith.constant 0 : i32
    return %arg0, %c0_i32, %c0_i32_0 : i32, i32, i32
  }
}

</mosaic_0001>

<llo_original>
// kernel: tpu_custom_call.1
$region0: #{tpu_custom_call.1}
  #allocation0 [shape = 'u32[]', space=smem, size = 0x4, offset = 0x4, fixed_abs, tag = 'smem constant byte address 0x4 - core index']
  #allocation1 [shape = 'u32[72,128]{1,0:T(1,128)}', space=vmem, size = 0x9000, scoped, tag = 'internal scratch']
  %s0 = inlined_call_operand.vmem [shape: f32[2,128,16], index: 0, kind: input, shape index: {}]
  %s1 = inlined_call_operand.vmem [shape: f32[2,128,16], index: 1, kind: input, shape index: {}]
  %s2 = inlined_call_operand.vmem [shape: f32[128,32], index: 2, kind: input, shape index: {}]
  %s3 = inlined_call_operand.vmem [shape: f32[1,32], index: 3, kind: input, shape index: {}]
  %s4 = inlined_call_operand.vmem [shape: f32[32,128], index: 4, kind: input, shape index: {}]
  %s5 = inlined_call_operand.vmem [shape: f32[1,128], index: 5, kind: input, shape index: {}]
  %s6 = inlined_call_operand.vmem [shape: f32[128,32], index: 6, kind: input, shape index: {}]
  %s7 = inlined_call_operand.vmem [shape: f32[1,32], index: 7, kind: input, shape index: {}]
  %s8 = inlined_call_operand.vmem [shape: f32[32,128], index: 8, kind: input, shape index: {}]
  %s9 = inlined_call_operand.vmem [shape: f32[1,128], index: 9, kind: input, shape index: {}]
  %s10 = inlined_call_operand.vmem [shape: f32[128,32], index: 10, kind: input, shape index: {}]
  %s11 = inlined_call_operand.vmem [shape: f32[1,32], index: 11, kind: input, shape index: {}]
  %s12 = inlined_call_operand.vmem [shape: f32[32,128], index: 12, kind: input, shape index: {}]
  %s13 = inlined_call_operand.vmem [shape: f32[1,128], index: 13, kind: input, shape index: {}]
  %s14 = inlined_call_operand.vmem [shape: f32[2,128,16], index: 14, kind: output, shape index: {}]
  %s15 = sld [smem:[#allocation0]]
  $region89: #{tpu_custom_call.1} parent=0
    _
  %s17 = ssub.s32 1, %s15
  %s18 = scalar_select 0, %s17, %s15
  loop: start=0, step=1, limit=4
  $region2: #{tpu_custom_call.1} parent=0 // loop_pre_header
    _
  $region3: #{tpu_custom_call.1} parent=0 // loop_header
    %s20 = sphi 0, %s24
    %p21 = scmp.ge.s32.totalorder %s20, 4
    %s30 = sphi 0, %s32
    %s33 = sphi 0, %s30
    %s34 = sphi 0, %s33
    %s50 = sphi 0, %s34
    %s56 = sphi 0, %s58
    %s59 = sphi 0, %s56
    %s60 = sphi 0, %s59
    %s76 = sphi 0, %s60
    %s80 = sphi 0, %s80
    %s82 = sphi 0, %s80
    %s83 = sphi 0, %s82
    %s97 = sphi 0, %s83
    %s101 = sphi 0, %s101
    %s103 = sphi 0, %s101
    %s104 = sphi 0, %s103
    %s118 = sphi 0, %s104
    %s122 = sphi 0, %s122
    %s124 = sphi 0, %s122
    %s125 = sphi 0, %s124
    %s139 = sphi 0, %s125
    %s143 = sphi 0, %s143
    %s145 = sphi 0, %s143
    %s146 = sphi 0, %s145
    %s160 = sphi 0, %s146
    %s164 = sphi 0, %s164
    %s166 = sphi 0, %s164
    %s167 = sphi 0, %s166
    %s181 = sphi 0, %s167
    %s185 = sphi 0, %s185
    %s187 = sphi 0, %s185
    %s188 = sphi 0, %s187
    %s202 = sphi 0, %s188
    %s206 = sphi 0, %s206
    %s208 = sphi 0, %s206
    %s209 = sphi 0, %s208
    %s223 = sphi 0, %s209
    %s227 = sphi 0, %s227
    %s229 = sphi 0, %s227
    %s230 = sphi 0, %s229
    %s244 = sphi 0, %s230
    %s248 = sphi 0, %s248
    %s250 = sphi 0, %s248
    %s251 = sphi 0, %s250
    %s265 = sphi 0, %s251
    %s269 = sphi 0, %s269
    %s271 = sphi 0, %s269
    %s272 = sphi 0, %s271
    %s286 = sphi 0, %s272
    %s290 = sphi 0, %s290
    %s292 = sphi 0, %s290
    %s293 = sphi 0, %s292
    %s307 = sphi 0, %s293
    %s311 = sphi 0, %s311
    %s313 = sphi 0, %s311
    %s314 = sphi 0, %s313
    %s328 = sphi 0, %s314
    %s334 = sphi 0, %s336
    %s337 = sphi 0, %s334
    %s338 = sphi 0, %s337
    %s354 = sphi 0, %s338
  $region4: #{tpu_custom_call.1} parent=0 // loop_header_branch
    %23 = sbr.rel (%p21) target = $region8
  $region5: #{tpu_custom_call.1} parent=0 // loop_body
    %s25 = ssub.s32 %s20, 1
    %s26 = ssub.s32 %s20, 2
    %s27 = sadd.s32 %s20, 1
    %s28 = ssub.s32 %s20, %s27
    %p29 = scmp.eq.s32.totalorder %s28, 0
    %s31 = sadd.s32 %s30, 1
    %s32 = scalar_select %p29, %s30, %s31
    %p35 = pneg %p29
    %p36 = scmp.eq.s32.totalorder %s20, 1
    %p37 = por %p35, %p36
    %p38 = scmp.ne.s32.totalorder %s30, %s33
    %p39 = scmp.eq.s32.totalorder %s20, 0
    %p40 = por %p38, %p39
    %p41 = scmp.ne.s32.totalorder %s30, %s33
    %p42 = scmp.eq.s32.totalorder %s25, 1
    %p43 = por %p41, %p42
    %p44 = scmp.ne.s32.totalorder %s33, %s34
    %p45 = scmp.eq.s32.totalorder %s25, 0
    %p46 = por %p44, %p45
    %p47 = scmp.ne.s32.totalorder %s33, %s34
    %p48 = scmp.eq.s32.totalorder %s26, 1
    %p49 = por %p47, %p48
    %p51 = scmp.ne.s32.totalorder %s34, %s50
    %p52 = scmp.eq.s32.totalorder %s26, 0
    %p53 = por %p51, %p52
    %s54 = ssub.s32 %s20, %s27
    %p55 = scmp.eq.s32.totalorder %s54, 0
    %s57 = sadd.s32 %s56, 1
    %s58 = scalar_select %p55, %s56, %s57
    %p61 = pneg %p55
    %p62 = scmp.eq.s32.totalorder %s20, 1
    %p63 = por %p61, %p62
    %p64 = scmp.ne.s32.totalorder %s56, %s59
    %p65 = scmp.eq.s32.totalorder %s20, 0
    %p66 = por %p64, %p65
    %p67 = scmp.ne.s32.totalorder %s56, %s59
    %p68 = scmp.eq.s32.totalorder %s25, 1
    %p69 = por %p67, %p68
    %p70 = scmp.ne.s32.totalorder %s59, %s60
    %p71 = scmp.eq.s32.totalorder %s25, 0
    %p72 = por %p70, %p71
    %p73 = scmp.ne.s32.totalorder %s59, %s60
    %p74 = scmp.eq.s32.totalorder %s26, 1
    %p75 = por %p73, %p74
    %p77 = scmp.ne.s32.totalorder %s60, %s76
    %p78 = scmp.eq.s32.totalorder %s26, 0
    %p79 = por %p77, %p78
    %s81 = sadd.s32 %s80, 1
    %p84 = scmp.eq.s32.totalorder %s20, 1
    %p85 = scmp.ne.s32.totalorder %s80, %s82
    %p86 = scmp.eq.s32.totalorder %s20, 0
    %p87 = por %p85, %p86
    %p88 = scmp.ne.s32.totalorder %s80, %s82
    %p89 = scmp.eq.s32.totalorder %s25, 1
    %p90 = por %p88, %p89
    %p91 = scmp.ne.s32.totalorder %s82, %s83
    %p92 = scmp.eq.s32.totalorder %s25, 0
    %p93 = por %p91, %p92
    %p94 = scmp.ne.s32.totalorder %s82, %s83
    %p95 = scmp.eq.s32.totalorder %s26, 1
    %p96 = por %p94, %p95
    %p98 = scmp.ne.s32.totalorder %s83, %s97
    %p99 = scmp.eq.s32.totalorder %s26, 0
    %p100 = por %p98, %p99
    %s102 = sadd.s32 %s101, 1
    %p105 = scmp.eq.s32.totalorder %s20, 1
    %p106 = scmp.ne.s32.totalorder %s101, %s103
    %p107 = scmp.eq.s32.totalorder %s20, 0
    %p108 = por %p106, %p107
    %p109 = scmp.ne.s32.totalorder %s101, %s103
    %p110 = scmp.eq.s32.totalorder %s25, 1
    %p111 = por %p109, %p110
    %p112 = scmp.ne.s32.totalorder %s103, %s104
    %p113 = scmp.eq.s32.totalorder %s25, 0
    %p114 = por %p112, %p113
    %p115 = scmp.ne.s32.totalorder %s103, %s104
    %p116 = scmp.eq.s32.totalorder %s26, 1
    %p117 = por %p115, %p116
    %p119 = scmp.ne.s32.totalorder %s104, %s118
    %p120 = scmp.eq.s32.totalorder %s26, 0
    %p121 = por %p119, %p120
    %s123 = sadd.s32 %s122, 1
    %p126 = scmp.eq.s32.totalorder %s20, 1
    %p127 = scmp.ne.s32.totalorder %s122, %s124
    %p128 = scmp.eq.s32.totalorder %s20, 0
    %p129 = por %p127, %p128
    %p130 = scmp.ne.s32.totalorder %s122, %s124
    %p131 = scmp.eq.s32.totalorder %s25, 1
    %p132 = por %p130, %p131
    %p133 = scmp.ne.s32.totalorder %s124, %s125
    %p134 = scmp.eq.s32.totalorder %s25, 0
    %p135 = por %p133, %p134
    %p136 = scmp.ne.s32.totalorder %s124, %s125
    %p137 = scmp.eq.s32.totalorder %s26, 1
    %p138 = por %p136, %p137
    %p140 = scmp.ne.s32.totalorder %s125, %s139
    %p141 = scmp.eq.s32.totalorder %s26, 0
    %p142 = por %p140, %p141
    %s144 = sadd.s32 %s143, 1
    %p147 = scmp.eq.s32.totalorder %s20, 1
    %p148 = scmp.ne.s32.totalorder %s143, %s145
    %p149 = scmp.eq.s32.totalorder %s20, 0
    %p150 = por %p148, %p149
    %p151 = scmp.ne.s32.totalorder %s143, %s145
    %p152 = scmp.eq.s32.totalorder %s25, 1
    %p153 = por %p151, %p152
    %p154 = scmp.ne.s32.totalorder %s145, %s146
    %p155 = scmp.eq.s32.totalorder %s25, 0
    %p156 = por %p154, %p155
    %p157 = scmp.ne.s32.totalorder %s145, %s146
    %p158 = scmp.eq.s32.totalorder %s26, 1
    %p159 = por %p157, %p158
    %p161 = scmp.ne.s32.totalorder %s146, %s160
    %p162 = scmp.eq.s32.totalorder %s26, 0
    %p163 = por %p161, %p162
    %s165 = sadd.s32 %s164, 1
    %p168 = scmp.eq.s32.totalorder %s20, 1
    %p169 = scmp.ne.s32.totalorder %s164, %s166
    %p170 = scmp.eq.s32.totalorder %s20, 0
    %p171 = por %p169, %p170
    %p172 = scmp.ne.s32.totalorder %s164, %s166
    %p173 = scmp.eq.s32.totalorder %s25, 1
    %p174 = por %p172, %p173
    %p175 = scmp.ne.s32.totalorder %s166, %s167
    %p176 = scmp.eq.s32.totalorder %s25, 0
    %p177 = por %p175, %p176
    %p178 = scmp.ne.s32.totalorder %s166, %s167
    %p179 = scmp.eq.s32.totalorder %s26, 1
    %p180 = por %p178, %p179
    %p182 = scmp.ne.s32.totalorder %s167, %s181
    %p183 = scmp.eq.s32.totalorder %s26, 0
    %p184 = por %p182, %p183
    %s186 = sadd.s32 %s185, 1
    %p189 = scmp.eq.s32.totalorder %s20, 1
    %p190 = scmp.ne.s32.totalorder %s185, %s187
    %p191 = scmp.eq.s32.totalorder %s20, 0
    %p192 = por %p190, %p191
    %p193 = scmp.ne.s32.totalorder %s185, %s187
    %p194 = scmp.eq.s32.totalorder %s25, 1
    %p195 = por %p193, %p194
    %p196 = scmp.ne.s32.totalorder %s187, %s188
    %p197 = scmp.eq.s32.totalorder %s25, 0
    %p198 = por %p196, %p197
    %p199 = scmp.ne.s32.totalorder %s187, %s188
    %p200 = scmp.eq.s32.totalorder %s26, 1
    %p201 = por %p199, %p200
    %p203 = scmp.ne.s32.totalorder %s188, %s202
    %p204 = scmp.eq.s32.totalorder %s26, 0
    %p205 = por %p203, %p204
    %s207 = sadd.s32 %s206, 1
    %p210 = scmp.eq.s32.totalorder %s20, 1
    %p211 = scmp.ne.s32.totalorder %s206, %s208
    %p212 = scmp.eq.s32.totalorder %s20, 0
    %p213 = por %p211, %p212
    %p214 = scmp.ne.s32.totalorder %s206, %s208
    %p215 = scmp.eq.s32.totalorder %s25, 1
    %p216 = por %p214, %p215
    %p217 = scmp.ne.s32.totalorder %s208, %s209
    %p218 = scmp.eq.s32.totalorder %s25, 0
    %p219 = por %p217, %p218
    %p220 = scmp.ne.s32.totalorder %s208, %s209
    %p221 = scmp.eq.s32.totalorder %s26, 1
    %p222 = por %p220, %p221
    %p224 = scmp.ne.s32.totalorder %s209, %s223
    %p225 = scmp.eq.s32.totalorder %s26, 0
    %p226 = por %p224, %p225
    %s228 = sadd.s32 %s227, 1
    %p231 = scmp.eq.s32.totalorder %s20, 1
    %p232 = scmp.ne.s32.totalorder %s227, %s229
    %p233 = scmp.eq.s32.totalorder %s20, 0
    %p234 = por %p232, %p233
    %p235 = scmp.ne.s32.totalorder %s227, %s229
    %p236 = scmp.eq.s32.totalorder %s25, 1
    %p237 = por %p235, %p236
    %p238 = scmp.ne.s32.totalorder %s229, %s230
    %p239 = scmp.eq.s32.totalorder %s25, 0
    %p240 = por %p238, %p239
    %p241 = scmp.ne.s32.totalorder %s229, %s230
    %p242 = scmp.eq.s32.totalorder %s26, 1
    %p243 = por %p241, %p242
    %p245 = scmp.ne.s32.totalorder %s230, %s244
    %p246 = scmp.eq.s32.totalorder %s26, 0
    %p247 = por %p245, %p246
    %s249 = sadd.s32 %s248, 1
    %p252 = scmp.eq.s32.totalorder %s20, 1
    %p253 = scmp.ne.s32.totalorder %s248, %s250
    %p254 = scmp.eq.s32.totalorder %s20, 0
    %p255 = por %p253, %p254
    %p256 = scmp.ne.s32.totalorder %s248, %s250
    %p257 = scmp.eq.s32.totalorder %s25, 1
    %p258 = por %p256, %p257
    %p259 = scmp.ne.s32.totalorder %s250, %s251
    %p260 = scmp.eq.s32.totalorder %s25, 0
    %p261 = por %p259, %p260
    %p262 = scmp.ne.s32.totalorder %s250, %s251
    %p263 = scmp.eq.s32.totalorder %s26, 1
    %p264 = por %p262, %p263
    %p266 = scmp.ne.s32.totalorder %s251, %s265
    %p267 = scmp.eq.s32.totalorder %s26, 0
    %p268 = por %p266, %p267
    %s270 = sadd.s32 %s269, 1
    %p273 = scmp.eq.s32.totalorder %s20, 1
    %p274 = scmp.ne.s32.totalorder %s269, %s271
    %p275 = scmp.eq.s32.totalorder %s20, 0
    %p276 = por %p274, %p275
    %p277 = scmp.ne.s32.totalorder %s269, %s271
    %p278 = scmp.eq.s32.totalorder %s25, 1
    %p279 = por %p277, %p278
    %p280 = scmp.ne.s32.totalorder %s271, %s272
    %p281 = scmp.eq.s32.totalorder %s25, 0
    %p282 = por %p280, %p281
    %p283 = scmp.ne.s32.totalorder %s271, %s272
    %p284 = scmp.eq.s32.totalorder %s26, 1
    %p285 = por %p283, %p284
    %p287 = scmp.ne.s32.totalorder %s272, %s286
    %p288 = scmp.eq.s32.totalorder %s26, 0
    %p289 = por %p287, %p288
    %s291 = sadd.s32 %s290, 1
    %p294 = scmp.eq.s32.totalorder %s20, 1
    %p295 = scmp.ne.s32.totalorder %s290, %s292
    %p296 = scmp.eq.s32.totalorder %s20, 0
    %p297 = por %p295, %p296
    %p298 = scmp.ne.s32.totalorder %s290, %s292
    %p299 = scmp.eq.s32.totalorder %s25, 1
    %p300 = por %p298, %p299
    %p301 = scmp.ne.s32.totalorder %s292, %s293
    %p302 = scmp.eq.s32.totalorder %s25, 0
    %p303 = por %p301, %p302
    %p304 = scmp.ne.s32.totalorder %s292, %s293
    %p305 = scmp.eq.s32.totalorder %s26, 1
    %p306 = por %p304, %p305
    %p308 = scmp.ne.s32.totalorder %s293, %s307
    %p309 = scmp.eq.s32.totalorder %s26, 0
    %p310 = por %p308, %p309
    %s312 = sadd.s32 %s311, 1
    %p315 = scmp.eq.s32.totalorder %s20, 1
    %p316 = scmp.ne.s32.totalorder %s311, %s313
    %p317 = scmp.eq.s32.totalorder %s20, 0
    %p318 = por %p316, %p317
    %p319 = scmp.ne.s32.totalorder %s311, %s313
    %p320 = scmp.eq.s32.totalorder %s25, 1
    %p321 = por %p319, %p320
    %p322 = scmp.ne.s32.totalorder %s313, %s314
    %p323 = scmp.eq.s32.totalorder %s25, 0
    %p324 = por %p322, %p323
    %p325 = scmp.ne.s32.totalorder %s313, %s314
    %p326 = scmp.eq.s32.totalorder %s26, 1
    %p327 = por %p325, %p326
    %p329 = scmp.ne.s32.totalorder %s314, %s328
    %p330 = scmp.eq.s32.totalorder %s26, 0
    %p331 = por %p329, %p330
    %s332 = ssub.s32 %s20, %s27
    %p333 = scmp.eq.s32.totalorder %s332, 0
    %s335 = sadd.s32 %s334, 1
    %s336 = scalar_select %p333, %s334, %s335
    %p339 = pneg %p333
    %p340 = scmp.eq.s32.totalorder %s20, 1
    %p341 = por %p339, %p340
    %p342 = scmp.ne.s32.totalorder %s334, %s337
    %p343 = scmp.eq.s32.totalorder %s20, 0
    %p344 = por %p342, %p343
    %p345 = scmp.ne.s32.totalorder %s334, %s337
    %p346 = scmp.eq.s32.totalorder %s25, 1
    %p347 = por %p345, %p346
    %p348 = scmp.ne.s32.totalorder %s337, %s338
    %p349 = scmp.eq.s32.totalorder %s25, 0
    %p350 = por %p348, %p349
    %p351 = scmp.ne.s32.totalorder %s337, %s338
    %p352 = scmp.eq.s32.totalorder %s26, 1
    %p353 = por %p351, %p352
    %p355 = scmp.ne.s32.totalorder %s338, %s354
    %p356 = scmp.eq.s32.totalorder %s26, 0
    %p357 = por %p355, %p356
    %p358 = scmp.le.s32.totalorder 1, %s20
    %p359 = scmp.lt.s32.totalorder %s20, 3
    %p360 = pnand %p358, %p359
    %p361 = pneg %p360
    // Predicated region
    $region9: #{tpu_custom_call.1} parent=5 // pred_check
      _
    $region10: #{tpu_custom_call.1} parent=5 // pred_check_branch
      %363 = sbr.rel (%p360) target = $region12
    $region11: #{tpu_custom_call.1} parent=5 // pred_region
      %s364 = ssub.s32 %s20, 1
      // Predicated region
      $region13: #{tpu_custom_call.1} parent=11 // pred_check
        %p365 = pneg %p93
      $region14: #{tpu_custom_call.1} parent=11 // pred_check_branch
        %367 = sbr.rel (%p365) target = $region16
      $region15: #{tpu_custom_call.1} parent=11 // pred_region
        _
      $region16: #{tpu_custom_call.1} parent=11 // pred_fallthru
        _
      // Predicated region
      $region17: #{tpu_custom_call.1} parent=11 // pred_check
        %p368 = pneg %p114
      $region18: #{tpu_custom_call.1} parent=11 // pred_check_branch
        %370 = sbr.rel (%p368) target = $region20
      $region19: #{tpu_custom_call.1} parent=11 // pred_region
        _
      $region20: #{tpu_custom_call.1} parent=11 // pred_fallthru
        _
      // Predicated region
      $region21: #{tpu_custom_call.1} parent=11 // pred_check
        %p371 = pneg %p135
      $region22: #{tpu_custom_call.1} parent=11 // pred_check_branch
        %373 = sbr.rel (%p371) target = $region24
      $region23: #{tpu_custom_call.1} parent=11 // pred_region
        _
      $region24: #{tpu_custom_call.1} parent=11 // pred_fallthru
        _
      // Predicated region
      $region25: #{tpu_custom_call.1} parent=11 // pred_check
        %p374 = pneg %p156
      $region26: #{tpu_custom_call.1} parent=11 // pred_check_branch
        %376 = sbr.rel (%p374) target = $region28
      $region27: #{tpu_custom_call.1} parent=11 // pred_region
        _
      $region28: #{tpu_custom_call.1} parent=11 // pred_fallthru
        _
      // Predicated region
      $region29: #{tpu_custom_call.1} parent=11 // pred_check
        %p377 = pneg %p177
      $region30: #{tpu_custom_call.1} parent=11 // pred_check_branch
        %379 = sbr.rel (%p377) target = $region32
      $region31: #{tpu_custom_call.1} parent=11 // pred_region
        _
      $region32: #{tpu_custom_call.1} parent=11 // pred_fallthru
        _
      // Predicated region
      $region33: #{tpu_custom_call.1} parent=11 // pred_check
        %p380 = pneg %p198
      $region34: #{tpu_custom_call.1} parent=11 // pred_check_branch
        %382 = sbr.rel (%p380) target = $region36
      $region35: #{tpu_custom_call.1} parent=11 // pred_region
        _
      $region36: #{tpu_custom_call.1} parent=11 // pred_fallthru
        _
      // Predicated region
      $region37: #{tpu_custom_call.1} parent=11 // pred_check
        %p383 = pneg %p219
      $region38: #{tpu_custom_call.1} parent=11 // pred_check_branch
        %385 = sbr.rel (%p383) target = $region40
      $region39: #{tpu_custom_call.1} parent=11 // pred_region
        _
      $region40: #{tpu_custom_call.1} parent=11 // pred_fallthru
        _
      // Predicated region
      $region41: #{tpu_custom_call.1} parent=11 // pred_check
        %p386 = pneg %p240
      $region42: #{tpu_custom_call.1} parent=11 // pred_check_branch
        %388 = sbr.rel (%p386) target = $region44
      $region43: #{tpu_custom_call.1} parent=11 // pred_region
        _
      $region44: #{tpu_custom_call.1} parent=11 // pred_fallthru
        _
      // Predicated region
      $region45: #{tpu_custom_call.1} parent=11 // pred_check
        %p389 = pneg %p261
      $region46: #{tpu_custom_call.1} parent=11 // pred_check_branch
        %391 = sbr.rel (%p389) target = $region48
      $region47: #{tpu_custom_call.1} parent=11 // pred_region
        _
      $region48: #{tpu_custom_call.1} parent=11 // pred_fallthru
        _
      // Predicated region
      $region49: #{tpu_custom_call.1} parent=11 // pred_check
        %p392 = pneg %p282
      $region50: #{tpu_custom_call.1} parent=11 // pred_check_branch
        %394 = sbr.rel (%p392) target = $region52
      $region51: #{tpu_custom_call.1} parent=11 // pred_region
        _
      $region52: #{tpu_custom_call.1} parent=11 // pred_fallthru
        _
      // Predicated region
      $region53: #{tpu_custom_call.1} parent=11 // pred_check
        %p395 = pneg %p303
      $region54: #{tpu_custom_call.1} parent=11 // pred_check_branch
        %397 = sbr.rel (%p395) target = $region56
      $region55: #{tpu_custom_call.1} parent=11 // pred_region
        _
      $region56: #{tpu_custom_call.1} parent=11 // pred_fallthru
        _
      // Predicated region
      $region57: #{tpu_custom_call.1} parent=11 // pred_check
        %p398 = pneg %p324
      $region58: #{tpu_custom_call.1} parent=11 // pred_check_branch
        %400 = sbr.rel (%p398) target = $region60
      $region59: #{tpu_custom_call.1} parent=11 // pred_region
        _
      $region60: #{tpu_custom_call.1} parent=11 // pred_fallthru
        _
    $region12: #{tpu_custom_call.1} parent=5 // pred_fallthru
      _
    %p401 = scmp.lt.s32.totalorder %s20, 2
    // Predicated region
    $region61: #{tpu_custom_call.1} parent=5 // pred_check
      %p402 = pneg %p401
    $region62: #{tpu_custom_call.1} parent=5 // pred_check_branch
      %404 = sbr.rel (%p402) target = $region64
    $region63: #{tpu_custom_call.1} parent=5 // pred_region
      // Predicated region
      $region65: #{tpu_custom_call.1} parent=63 // pred_check
        %p405 = pneg %p40
      $region66: #{tpu_custom_call.1} parent=63 // pred_check_branch
        %407 = sbr.rel (%p405) target = $region68
      $region67: #{tpu_custom_call.1} parent=63 // pred_region
        %p408 = scmp.lt.s32.totalorder %s20, 1
        %s409 = scalar_select %p408, %s20, 1
        %s410 = smul.addr %s409, 16
        %s411 = smul.addr %s410, 8
        %s412 = scalar_lea.vmem %s0, %s411
      $region68: #{tpu_custom_call.1} parent=63 // pred_fallthru
        _
      // Predicated region
      $region69: #{tpu_custom_call.1} parent=63 // pred_check
        %p413 = pneg %p66
      $region70: #{tpu_custom_call.1} parent=63 // pred_check_branch
        %415 = sbr.rel (%p413) target = $region72
      $region71: #{tpu_custom_call.1} parent=63 // pred_region
        %p416 = scmp.lt.s32.totalorder %s20, 1
        %s417 = scalar_select %p416, %s20, 1
        %s418 = smul.addr %s417, 16
        %s419 = smul.addr %s418, 8
        %s420 = scalar_lea.vmem %s1, %s419
      $region72: #{tpu_custom_call.1} parent=63 // pred_fallthru
        _
    $region64: #{tpu_custom_call.1} parent=5 // pred_fallthru
      _
    %p421 = scmp.le.s32.totalorder 1, %s20
    %p422 = scmp.lt.s32.totalorder %s20, 3
    %p423 = pnand %p421, %p422
    %p424 = pneg %p423
    // Predicated region
    $region73: #{tpu_custom_call.1} parent=5 // pred_check
      _
    $region74: #{tpu_custom_call.1} parent=5 // pred_check_branch
      %426 = sbr.rel (%p423) target = $region76
    $region75: #{tpu_custom_call.1} parent=5 // pred_region
      %s427 = ssub.s32 %s20, 1
      %p428 = scmp.lt.s32.totalorder %s25, 1
      %s429 = scalar_select %p428, %s25, 1
      %s430 = smul.addr %s429, 16
      %s431 = smul.addr %s430, 8
      %s432 = scalar_lea.vmem %s0, %s431
      %p433 = pneg %p46
      %p434 = pneg %p43
      %p435 = scmp.lt.s32.totalorder %s25, 1
      %s436 = scalar_select %p435, %s25, 1
      %s437 = smul.addr %s436, 16
      %s438 = smul.addr %s437, 8
      %s439 = scalar_lea.vmem %s1, %s438
      %p440 = pneg %p72
      %p441 = pneg %p69
      %p442 = pneg %p93
      %p443 = pneg %p90
      %p444 = pneg %p114
      %p445 = pneg %p111
      %p446 = pneg %p135
      %p447 = pneg %p132
      %p448 = pneg %p156
      %p449 = pneg %p153
      %p450 = pneg %p177
      %p451 = pneg %p174
      %p452 = pneg %p198
      %p453 = pneg %p195
      %p454 = pneg %p219
      %p455 = pneg %p216
      %p456 = pneg %p240
      %p457 = pneg %p237
      %p458 = pneg %p261
      %p459 = pneg %p258
      %p460 = pneg %p282
      %p461 = pneg %p279
      %p462 = pneg %p303
      %p463 = pneg %p300
      %p464 = pneg %p324
      %p465 = pneg %p321
      %p466 = pneg %p350
      %p467 = pneg %p347
      %p468 = scmp.lt.s32.totalorder %s25, 1
      %s469 = scalar_select %p468, %s25, 1
      %s470 = smul.addr %s469, 16
      %s471 = smul.addr %s470, 8
      %s472 = scalar_lea.vmem %s14, %s471
      %p473 = scmp.lt.s32.totalorder %s25, 1
      %s474 = scalar_select %p473, %s25, 1
      %s475 = smul.addr %s474, 16
      %s476 = smul.addr %s475, 8
      %s477 = scalar_lea.vmem %s0, %s476
      %p478 = scmp.lt.s32.totalorder %s25, 1
      %s479 = scalar_select %p478, %s25, 1
      %s480 = smul.addr %s479, 16
      %s481 = smul.addr %s480, 8
      %s482 = scalar_lea.vmem %s1, %s481
      %p483 = scmp.lt.s32.totalorder %s25, 1
      %s484 = scalar_select %p483, %s25, 1
      %s485 = smul.addr %s484, 16
      %s486 = smul.addr %s485, 8
      %s487 = scalar_lea.vmem %s14, %s486
      %v488 = vld [vmem:[%s477] sm:$0xff]
      %v489 = vld [vmem:[%s477 + $0x8] sm:$0xff]
      %v490 = vld [vmem:[%s477 + $0x10] sm:$0xff]
      %v491 = vld [vmem:[%s477 + $0x18] sm:$0xff]
      %v492 = vld [vmem:[%s477 + $0x20] sm:$0xff]
      %v493 = vld [vmem:[%s477 + $0x28] sm:$0xff]
      %v494 = vld [vmem:[%s477 + $0x30] sm:$0xff]
      %v495 = vld [vmem:[%s477 + $0x38] sm:$0xff]
      %v496 = vld [vmem:[%s477 + $0x40] sm:$0xff]
      %v497 = vld [vmem:[%s477 + $0x48] sm:$0xff]
      %v498 = vld [vmem:[%s477 + $0x50] sm:$0xff]
      %v499 = vld [vmem:[%s477 + $0x58] sm:$0xff]
      %v500 = vld [vmem:[%s477 + $0x60] sm:$0xff]
      %v501 = vld [vmem:[%s477 + $0x68] sm:$0xff]
      %v502 = vld [vmem:[%s477 + $0x70] sm:$0xff]
      %v503 = vld [vmem:[%s477 + $0x78] sm:$0xff]
      %504 = vxpose.xlu0.b32.start [1/16] %v488, 128
      %505 = vxpose.xlu0.b32.cont [2/16] %v489, 128
      %506 = vxpose.xlu0.b32.cont [3/16] %v490, 128
      %507 = vxpose.xlu0.b32.cont [4/16] %v491, 128
      %508 = vxpose.xlu0.b32.cont [5/16] %v492, 128
      %509 = vxpose.xlu0.b32.cont [6/16] %v493, 128
      %510 = vxpose.xlu0.b32.cont [7/16] %v494, 128
      %511 = vxpose.xlu0.b32.cont [8/16] %v495, 128
      %512 = vxpose.xlu0.b32.cont [9/16] %v496, 128
      %513 = vxpose.xlu0.b32.cont [10/16] %v497, 128
      %514 = vxpose.xlu0.b32.cont [11/16] %v498, 128
      %515 = vxpose.xlu0.b32.cont [12/16] %v499, 128
      %516 = vxpose.xlu0.b32.cont [13/16] %v500, 128
      %517 = vxpose.xlu0.b32.cont [14/16] %v501, 128
      %518 = vxpose.xlu0.b32.cont [15/16] %v502, 128
      %519 = vxpose.xlu0.b32.end [16/16] %v503, 128
      %v520 = vpop.trf.xlu0
      %v521 = vpop.trf.xlu0
      %v522 = vpop.trf.xlu0
      %v523 = vpop.trf.xlu0
      %v524 = vpop.trf.xlu0
      %v525 = vpop.trf.xlu0
      %v526 = vpop.trf.xlu0
      %v527 = vpop.trf.xlu0
      %v528 = vpop.trf.xlu0
      %v529 = vpop.trf.xlu0
      %v530 = vpop.trf.xlu0
      %v531 = vpop.trf.xlu0
      %v532 = vpop.trf.xlu0
      %v533 = vpop.trf.xlu0
      %v534 = vpop.trf.xlu0
      %v535 = vpop.trf.xlu0
      %v536 = vld [vmem:[%s482] sm:$0xff]
      %v537 = vld [vmem:[%s482 + $0x8] sm:$0xff]
      %v538 = vld [vmem:[%s482 + $0x10] sm:$0xff]
      %v539 = vld [vmem:[%s482 + $0x18] sm:$0xff]
      %v540 = vld [vmem:[%s482 + $0x20] sm:$0xff]
      %v541 = vld [vmem:[%s482 + $0x28] sm:$0xff]
      %v542 = vld [vmem:[%s482 + $0x30] sm:$0xff]
      %v543 = vld [vmem:[%s482 + $0x38] sm:$0xff]
      %v544 = vld [vmem:[%s482 + $0x40] sm:$0xff]
      %v545 = vld [vmem:[%s482 + $0x48] sm:$0xff]
      %v546 = vld [vmem:[%s482 + $0x50] sm:$0xff]
      %v547 = vld [vmem:[%s482 + $0x58] sm:$0xff]
      %v548 = vld [vmem:[%s482 + $0x60] sm:$0xff]
      %v549 = vld [vmem:[%s482 + $0x68] sm:$0xff]
      %v550 = vld [vmem:[%s482 + $0x70] sm:$0xff]
      %v551 = vld [vmem:[%s482 + $0x78] sm:$0xff]
      %552 = vxpose.xlu0.b32.start [1/16] %v536, 128
      %553 = vxpose.xlu0.b32.cont [2/16] %v537, 128
      %554 = vxpose.xlu0.b32.cont [3/16] %v538, 128
      %555 = vxpose.xlu0.b32.cont [4/16] %v539, 128
      %556 = vxpose.xlu0.b32.cont [5/16] %v540, 128
      %557 = vxpose.xlu0.b32.cont [6/16] %v541, 128
      %558 = vxpose.xlu0.b32.cont [7/16] %v542, 128
      %559 = vxpose.xlu0.b32.cont [8/16] %v543, 128
      %560 = vxpose.xlu0.b32.cont [9/16] %v544, 128
      %561 = vxpose.xlu0.b32.cont [10/16] %v545, 128
      %562 = vxpose.xlu0.b32.cont [11/16] %v546, 128
      %563 = vxpose.xlu0.b32.cont [12/16] %v547, 128
      %564 = vxpose.xlu0.b32.cont [13/16] %v548, 128
      %565 = vxpose.xlu0.b32.cont [14/16] %v549, 128
      %566 = vxpose.xlu0.b32.cont [15/16] %v550, 128
      %567 = vxpose.xlu0.b32.end [16/16] %v551, 128
      %v568 = vpop.trf.xlu0
      %v569 = vpop.trf.xlu0
      %v570 = vpop.trf.xlu0
      %v571 = vpop.trf.xlu0
      %v572 = vpop.trf.xlu0
      %v573 = vpop.trf.xlu0
      %v574 = vpop.trf.xlu0
      %v575 = vpop.trf.xlu0
      %v576 = vpop.trf.xlu0
      %v577 = vpop.trf.xlu0
      %v578 = vpop.trf.xlu0
      %v579 = vpop.trf.xlu0
      %v580 = vpop.trf.xlu0
      %v581 = vpop.trf.xlu0
      %v582 = vpop.trf.xlu0
      %v583 = vpop.trf.xlu0
      %v584 = vld [vmem:[%s2] sm:$0xff]
      %v585 = vld [vmem:[%s2 + $0x8] sm:$0xff]
      %v586 = vld [vmem:[%s2 + $0x10] sm:$0xff]
      %v587 = vld [vmem:[%s2 + $0x18] sm:$0xff]
      %v588 = vld [vmem:[%s2 + $0x20] sm:$0xff]
      %v589 = vld [vmem:[%s2 + $0x28] sm:$0xff]
      %v590 = vld [vmem:[%s2 + $0x30] sm:$0xff]
      %v591 = vld [vmem:[%s2 + $0x38] sm:$0xff]
      %v592 = vld [vmem:[%s2 + $0x40] sm:$0xff]
      %v593 = vld [vmem:[%s2 + $0x48] sm:$0xff]
      %v594 = vld [vmem:[%s2 + $0x50] sm:$0xff]
      %v595 = vld [vmem:[%s2 + $0x58] sm:$0xff]
      %v596 = vld [vmem:[%s2 + $0x60] sm:$0xff]
      %v597 = vld [vmem:[%s2 + $0x68] sm:$0xff]
      %v598 = vld [vmem:[%s2 + $0x70] sm:$0xff]
      %v599 = vld [vmem:[%s2 + $0x78] sm:$0xff]
      %v600 = vld [vmem:[%s3] sm:$0x1]
      %v601 = vld [vmem:[%s4] sm:$0xff]
      %v602 = vld [vmem:[%s4 + $0x8] sm:$0xff]
      %v603 = vld [vmem:[%s4 + $0x10] sm:$0xff]
      %v604 = vld [vmem:[%s4 + $0x18] sm:$0xff]
      %v605 = vld [vmem:[%s5] sm:$0x1]
      %v606 = vld [vmem:[%s6] sm:$0xff]
      %v607 = vld [vmem:[%s6 + $0x8] sm:$0xff]
      %v608 = vld [vmem:[%s6 + $0x10] sm:$0xff]
      %v609 = vld [vmem:[%s6 + $0x18] sm:$0xff]
      %v610 = vld [vmem:[%s6 + $0x20] sm:$0xff]
      %v611 = vld [vmem:[%s6 + $0x28] sm:$0xff]
      %v612 = vld [vmem:[%s6 + $0x30] sm:$0xff]
      %v613 = vld [vmem:[%s6 + $0x38] sm:$0xff]
      %v614 = vld [vmem:[%s6 + $0x40] sm:$0xff]
      %v615 = vld [vmem:[%s6 + $0x48] sm:$0xff]
      %v616 = vld [vmem:[%s6 + $0x50] sm:$0xff]
      %v617 = vld [vmem:[%s6 + $0x58] sm:$0xff]
      %v618 = vld [vmem:[%s6 + $0x60] sm:$0xff]
      %v619 = vld [vmem:[%s6 + $0x68] sm:$0xff]
      %v620 = vld [vmem:[%s6 + $0x70] sm:$0xff]
      %v621 = vld [vmem:[%s6 + $0x78] sm:$0xff]
      %v622 = vld [vmem:[%s7] sm:$0x1]
      %v623 = vld [vmem:[%s8] sm:$0xff]
      %v624 = vld [vmem:[%s8 + $0x8] sm:$0xff]
      %v625 = vld [vmem:[%s8 + $0x10] sm:$0xff]
      %v626 = vld [vmem:[%s8 + $0x18] sm:$0xff]
      %v627 = vld [vmem:[%s9] sm:$0x1]
      %v628 = vld [vmem:[%s10] sm:$0xff]
      %v629 = vld [vmem:[%s10 + $0x8] sm:$0xff]
      %v630 = vld [vmem:[%s10 + $0x10] sm:$0xff]
      %v631 = vld [vmem:[%s10 + $0x18] sm:$0xff]
      %v632 = vld [vmem:[%s10 + $0x20] sm:$0xff]
      %v633 = vld [vmem:[%s10 + $0x28] sm:$0xff]
      %v634 = vld [vmem:[%s10 + $0x30] sm:$0xff]
      %v635 = vld [vmem:[%s10 + $0x38] sm:$0xff]
      %v636 = vld [vmem:[%s10 + $0x40] sm:$0xff]
      %v637 = vld [vmem:[%s10 + $0x48] sm:$0xff]
      %v638 = vld [vmem:[%s10 + $0x50] sm:$0xff]
      %v639 = vld [vmem:[%s10 + $0x58] sm:$0xff]
      %v640 = vld [vmem:[%s10 + $0x60] sm:$0xff]
      %v641 = vld [vmem:[%s10 + $0x68] sm:$0xff]
      %v642 = vld [vmem:[%s10 + $0x70] sm:$0xff]
      %v643 = vld [vmem:[%s10 + $0x78] sm:$0xff]
      %v644 = vld [vmem:[%s11] sm:$0x1]
      %v645 = vld [vmem:[%s12] sm:$0xff]
      %v646 = vld [vmem:[%s12 + $0x8] sm:$0xff]
      %v647 = vld [vmem:[%s12 + $0x10] sm:$0xff]
      %v648 = vld [vmem:[%s12 + $0x18] sm:$0xff]
      %v649 = vld [vmem:[%s13] sm:$0x1]
      %v650 = vsub.f32 %v520, %v568
      %v651 = vsub.f32 %v521, %v569
      %v652 = vadd.f32 %v520, %v568
      %v653 = vadd.f32 %v521, %v569
      %v655 = vperm.slane %v600, 0
      %657 = vmatpush.msra.mxu0 %v599
      %658 = vmatpush.msra.mxu0 %v598
      %659 = vmatpush.msra.mxu0 %v597
      %660 = vmatpush.msra.mxu0 %v596
      %661 = vmatpush.msra.mxu0 %v595
      %662 = vmatpush.msra.mxu0 %v594
      %663 = vmatpush.msra.mxu0 %v593
      %664 = vmatpush.msra.mxu0 %v592
      %665 = vmatpush.msra.mxu0 %v591
      %666 = vmatpush.msra.mxu0 %v590
      %667 = vmatpush.msra.mxu0 %v589
      %668 = vmatpush.msra.mxu0 %v588
      %669 = vmatpush.msra.mxu0 %v587
      %670 = vmatpush.msra.mxu0 %v586
      %671 = vmatpush.msra.mxu0 %v585
      %672 = vmatpush.msra.mxu0 %v584
      %673 = vmatmul.f32.gmra.mxu0 %v652
      %v674 = vpop.f32.mrf.mxu0
      %v675 = vadd.f32 %v655, %v674
      %676 = vmatmul.f32.gmra.mxu0 %v653
      %v677 = vpop.f32.mrf.mxu0
      %v678 = vadd.f32 %v655, %v677
      %679 = vdwg.mxu0
      %v680 = vmax.f32 %v675, 0.0
      %v681 = vmax.f32 %v678, 0.0
      %v683 = vperm.slane %v605, 0
      %vm685 = vcmask 261120
      %v687 = vsel %vm685, %v680, 0
      %v690 = vsel %vm685, %v681, 0
      %692 = vmatpush.msra.mxu0 0.0
      %693 = vmatpush.msra.mxu0 0.0
      %694 = vmatpush.msra.mxu0 0.0
      %695 = vmatpush.msra.mxu0 0.0
      %696 = vmatpush.msra.mxu0 0.0
      %697 = vmatpush.msra.mxu0 0.0
      %698 = vmatpush.msra.mxu0 0.0
      %699 = vmatpush.msra.mxu0 0.0
      %700 = vmatpush.msra.mxu0 0.0
      %701 = vmatpush.msra.mxu0 0.0
      %702 = vmatpush.msra.mxu0 0.0
      %703 = vmatpush.msra.mxu0 0.0
      %704 = vmatpush.msra.mxu0 %v604
      %705 = vmatpush.msra.mxu0 %v603
      %706 = vmatpush.msra.mxu0 %v602
      %707 = vmatpush.msra.mxu0 %v601
      %708 = vmatmul.f32.gmra.mxu0 %v687
      %v709 = vpop.f32.mrf.mxu0
      %v710 = vadd.f32 %v683, %v709
      %711 = vmatmul.f32.gmra.mxu0 %v690
      %v712 = vpop.f32.mrf.mxu0
      %v713 = vadd.f32 %v683, %v712
      %714 = vdwg.mxu0
      %v715 = vadd.f32 %v652, %v653
      %v716 = vrot.slane %v715, 4
      %v717 = vadd.f32 %v715, %v716
      %v718 = vrot.slane %v717, 2
      %v719 = vadd.f32 %v717, %v718
      %v720 = vrot.slane %v719, 1
      %v721 = vadd.f32 %v719, %v720
      %v722 = vrcp.pop 16.0
      %v723 = vmul.f32 16.0, %v722
      %v724 = vsub.f32 1.0, %v723
      %v725 = vmul.f32 %v722, %v724
      %v726 = vadd.f32 %v722, %v725
      %vm727 = vweird.f32 %v722
      %v728 = vsel %vm727, %v722, %v726
      %v729 = vmul.f32 %v721, %v728
      %730 = vmatpush.msra.mxu0 %v621
      %731 = vmatpush.msra.mxu0 %v620
      %732 = vmatpush.msra.mxu0 %v619
      %733 = vmatpush.msra.mxu0 %v618
      %734 = vmatpush.msra.mxu0 %v617
      %735 = vmatpush.msra.mxu0 %v616
      %736 = vmatpush.msra.mxu0 %v615
      %737 = vmatpush.msra.mxu0 %v614
      %738 = vmatpush.msra.mxu0 %v613
      %739 = vmatpush.msra.mxu0 %v612
      %740 = vmatpush.msra.mxu0 %v611
      %741 = vmatpush.msra.mxu0 %v610
      %742 = vmatpush.msra.mxu0 %v609
      %743 = vmatpush.msra.mxu0 %v608
      %744 = vmatpush.msra.mxu0 %v607
      %745 = vmatpush.msra.mxu0 %v606
      %746 = vmatmul.f32.gmra.mxu0 %v729
      %v747 = vpop.f32.mrf.mxu0
      %v748 = vadd.f32 %v622, %v747
      %749 = vdwg.mxu0
      %v750 = vmax.f32 %v748, 0.0
      %v752 = vsel %vm685, %v750, 0
      %754 = vmatpush.msra.mxu0 0.0
      %755 = vmatpush.msra.mxu0 0.0
      %756 = vmatpush.msra.mxu0 0.0
      %757 = vmatpush.msra.mxu0 0.0
      %758 = vmatpush.msra.mxu0 0.0
      %759 = vmatpush.msra.mxu0 0.0
      %760 = vmatpush.msra.mxu0 0.0
      %761 = vmatpush.msra.mxu0 0.0
      %762 = vmatpush.msra.mxu0 0.0
      %763 = vmatpush.msra.mxu0 0.0
      %764 = vmatpush.msra.mxu0 0.0
      %765 = vmatpush.msra.mxu0 0.0
      %766 = vmatpush.msra.mxu0 %v626
      %767 = vmatpush.msra.mxu0 %v625
      %768 = vmatpush.msra.mxu0 %v624
      %769 = vmatpush.msra.mxu0 %v623
      %770 = vmatmul.f32.gmra.mxu0 %v752
      %v771 = vpop.f32.mrf.mxu0
      %v772 = vadd.f32 %v627, %v771
      %773 = vdwg.mxu0
      %v774 = vperm.slane %v772, 0
      %v775 = vadd.f32 %v710, %v774
      %v776 = vadd.f32 %v713, %v774
      %v777 = vxor.u32 %v775, 2147483648
      %v778 = vxor.u32 %v776, 2147483648
      %v779 = vmul.f32 %v777, 1.442695
      %v780 = vpow.pop %v779
      %v781 = vmul.f32 %v778, 1.442695
      %v782 = vpow.pop %v781
      %v783 = vadd.f32 %v780, 1.0
      %v784 = vadd.f32 %v782, 1.0
      %v785 = vrcp.pop %v783
      %v786 = vmul.f32 %v783, %v785
      %v787 = vsub.f32 1.0, %v786
      %v788 = vmul.f32 %v785, %v787
      %v789 = vadd.f32 %v785, %v788
      %vm790 = vweird.f32 %v783
      %vm791 = vweird.f32 %v785
      %vm792 = vmor %vm790, %vm791
      %v793 = vsel %vm792, %v785, %v789
      %v794 = vand.u32 2147483647, %v783
      %vm795 = vcmp.eq.f32.partialorder %v794, 8.507059e+37
      %v796 = vand.u32 %v783, 2147483648
      %v797 = vor.u32 1.1754944e-38, %v796
      %v798 = vsel %vm795, %v797, %v793
      %v799 = vmul.f32 1.0, %v798
      %v800 = vrcp.pop %v784
      %v801 = vmul.f32 %v784, %v800
      %v802 = vsub.f32 1.0, %v801
      %v803 = vmul.f32 %v800, %v802
      %v804 = vadd.f32 %v800, %v803
      %vm805 = vweird.f32 %v784
      %vm806 = vweird.f32 %v800
      %vm807 = vmor %vm805, %vm806
      %v808 = vsel %vm807, %v800, %v804
      %v809 = vand.u32 2147483647, %v784
      %vm810 = vcmp.eq.f32.partialorder %v809, 8.507059e+37
      %v811 = vand.u32 %v784, 2147483648
      %v812 = vor.u32 1.1754944e-38, %v811
      %v813 = vsel %vm810, %v812, %v808
      %v814 = vmul.f32 1.0, %v813
      %v815 = vmul.f32 %v650, %v799
      %v816 = vmul.f32 %v651, %v814
      %v817 = vadd.f32 %v568, %v815
      %v818 = vadd.f32 %v569, %v816
      %v820 = vperm.slane %v644, 0
      %822 = vmatpush.msra.mxu0 %v643
      %823 = vmatpush.msra.mxu0 %v642
      %824 = vmatpush.msra.mxu0 %v641
      %825 = vmatpush.msra.mxu0 %v640
      %826 = vmatpush.msra.mxu0 %v639
      %827 = vmatpush.msra.mxu0 %v638
      %828 = vmatpush.msra.mxu0 %v637
      %829 = vmatpush.msra.mxu0 %v636
      %830 = vmatpush.msra.mxu0 %v635
      %831 = vmatpush.msra.mxu0 %v634
      %832 = vmatpush.msra.mxu0 %v633
      %833 = vmatpush.msra.mxu0 %v632
      %834 = vmatpush.msra.mxu0 %v631
      %835 = vmatpush.msra.mxu0 %v630
      %836 = vmatpush.msra.mxu0 %v629
      %837 = vmatpush.msra.mxu0 %v628
      %838 = vmatmul.f32.gmra.mxu0 %v817
      %v839 = vpop.f32.mrf.mxu0
      %v840 = vadd.f32 %v820, %v839
      %841 = vmatmul.f32.gmra.mxu0 %v818
      %v842 = vpop.f32.mrf.mxu0
      %v843 = vadd.f32 %v820, %v842
      %844 = vdwg.mxu0
      %v845 = vmax.f32 %v840, 0.0
      %v846 = vmax.f32 %v843, 0.0
      %v848 = vperm.slane %v649, 0
      %v851 = vsel %vm685, %v845, 0
      %v854 = vsel %vm685, %v846, 0
      %856 = vmatpush.msra.mxu0 0.0
      %857 = vmatpush.msra.mxu0 0.0
      %858 = vmatpush.msra.mxu0 0.0
      %859 = vmatpush.msra.mxu0 0.0
      %860 = vmatpush.msra.mxu0 0.0
      %861 = vmatpush.msra.mxu0 0.0
      %862 = vmatpush.msra.mxu0 0.0
      %863 = vmatpush.msra.mxu0 0.0
      %864 = vmatpush.msra.mxu0 0.0
      %865 = vmatpush.msra.mxu0 0.0
      %866 = vmatpush.msra.mxu0 0.0
      %867 = vmatpush.msra.mxu0 0.0
      %868 = vmatpush.msra.mxu0 %v648
      %869 = vmatpush.msra.mxu0 %v647
      %870 = vmatpush.msra.mxu0 %v646
      %871 = vmatpush.msra.mxu0 %v645
      %872 = vmatmul.f32.gmra.mxu0 %v851
      %v873 = vpop.f32.mrf.mxu0
      %v874 = vadd.f32 %v848, %v873
      %875 = vmatmul.f32.gmra.mxu0 %v854
      %v876 = vpop.f32.mrf.mxu0
      %v877 = vadd.f32 %v848, %v876
      %878 = vdwg.mxu0
      %v879 = vadd.f32 %v817, %v818
      %v880 = vrot.slane %v879, 4
      %v881 = vadd.f32 %v879, %v880
      %v882 = vrot.slane %v881, 2
      %v883 = vadd.f32 %v881, %v882
      %v884 = vrot.slane %v883, 1
      %v885 = vadd.f32 %v883, %v884
      %v886 = vmul.f32 %v885, %v728
      %887 = vmatpush.msra.mxu0 %v621
      %888 = vmatpush.msra.mxu0 %v620
      %889 = vmatpush.msra.mxu0 %v619
      %890 = vmatpush.msra.mxu0 %v618
      %891 = vmatpush.msra.mxu0 %v617
      %892 = vmatpush.msra.mxu0 %v616
      %893 = vmatpush.msra.mxu0 %v615
      %894 = vmatpush.msra.mxu0 %v614
      %895 = vmatpush.msra.mxu0 %v613
      %896 = vmatpush.msra.mxu0 %v612
      %897 = vmatpush.msra.mxu0 %v611
      %898 = vmatpush.msra.mxu0 %v610
      %899 = vmatpush.msra.mxu0 %v609
      %900 = vmatpush.msra.mxu0 %v608
      %901 = vmatpush.msra.mxu0 %v607
      %902 = vmatpush.msra.mxu0 %v606
      %903 = vmatmul.f32.gmra.mxu0 %v886
      %v904 = vpop.f32.mrf.mxu0
      %v905 = vadd.f32 %v622, %v904
      %906 = vdwg.mxu0
      %v907 = vmax.f32 %v905, 0.0
      %v909 = vsel %vm685, %v907, 0
      %911 = vmatpush.msra.mxu0 0.0
      %912 = vmatpush.msra.mxu0 0.0
      %913 = vmatpush.msra.mxu0 0.0
      %914 = vmatpush.msra.mxu0 0.0
      %915 = vmatpush.msra.mxu0 0.0
      %916 = vmatpush.msra.mxu0 0.0
      %917 = vmatpush.msra.mxu0 0.0
      %918 = vmatpush.msra.mxu0 0.0
      %919 = vmatpush.msra.mxu0 0.0
      %920 = vmatpush.msra.mxu0 0.0
      %921 = vmatpush.msra.mxu0 0.0
      %922 = vmatpush.msra.mxu0 0.0
      %923 = vmatpush.msra.mxu0 %v626
      %924 = vmatpush.msra.mxu0 %v625
      %925 = vmatpush.msra.mxu0 %v624
      %926 = vmatpush.msra.mxu0 %v623
      %927 = vmatmul.f32.gmra.mxu0 %v909
      %v928 = vpop.f32.mrf.mxu0
      %v929 = vadd.f32 %v627, %v928
      %930 = vdwg.mxu0
      %v931 = vperm.slane %v929, 0
      %v932 = vadd.f32 %v874, %v931
      %v933 = vadd.f32 %v877, %v931
      %v934 = vxor.u32 %v932, 2147483648
      %v935 = vxor.u32 %v933, 2147483648
      %v936 = vmul.f32 %v934, 1.442695
      %v937 = vpow.pop %v936
      %v938 = vmul.f32 %v935, 1.442695
      %v939 = vpow.pop %v938
      %v940 = vadd.f32 %v937, 1.0
      %v941 = vadd.f32 %v939, 1.0
      %v942 = vrcp.pop %v940
      %v943 = vmul.f32 %v940, %v942
      %v944 = vsub.f32 1.0, %v943
      %v945 = vmul.f32 %v942, %v944
      %v946 = vadd.f32 %v942, %v945
      %vm947 = vweird.f32 %v940
      %vm948 = vweird.f32 %v942
      %vm949 = vmor %vm947, %vm948
      %v950 = vsel %vm949, %v942, %v946
      %v951 = vand.u32 2147483647, %v940
      %vm952 = vcmp.eq.f32.partialorder %v951, 8.507059e+37
      %v953 = vand.u32 %v940, 2147483648
      %v954 = vor.u32 1.1754944e-38, %v953
      %v955 = vsel %vm952, %v954, %v950
      %v956 = vmul.f32 1.0, %v955
      %v957 = vrcp.pop %v941
      %v958 = vmul.f32 %v941, %v957
      %v959 = vsub.f32 1.0, %v958
      %v960 = vmul.f32 %v957, %v959
      %v961 = vadd.f32 %v957, %v960
      %vm962 = vweird.f32 %v941
      %vm963 = vweird.f32 %v957
      %vm964 = vmor %vm962, %vm963
      %v965 = vsel %vm964, %v957, %v961
      %v966 = vand.u32 2147483647, %v941
      %vm967 = vcmp.eq.f32.partialorder %v966, 8.507059e+37
      %v968 = vand.u32 %v941, 2147483648
      %v969 = vor.u32 1.1754944e-38, %v968
      %v970 = vsel %vm967, %v969, %v965
      %v971 = vmul.f32 1.0, %v970
      %v972 = vmul.f32 %v650, %v956
      %v973 = vmul.f32 %v651, %v971
      %v974 = vadd.f32 %v568, %v972
      %v975 = vadd.f32 %v569, %v973
      %976 = vxpose.xlu0.b32.start [1/16] %v974, 128
      %977 = vxpose.xlu0.b32.cont [2/16] %v975, 128
      %978 = vxpose.xlu0.b32.cont [3/16] 0.0, 128
      %979 = vxpose.xlu0.b32.cont [4/16] 0.0, 128
      %980 = vxpose.xlu0.b32.cont [5/16] 0.0, 128
      %981 = vxpose.xlu0.b32.cont [6/16] 0.0, 128
      %982 = vxpose.xlu0.b32.cont [7/16] 0.0, 128
      %983 = vxpose.xlu0.b32.cont [8/16] 0.0, 128
      %984 = vxpose.xlu0.b32.cont [9/16] 0.0, 128
      %985 = vxpose.xlu0.b32.cont [10/16] 0.0, 128
      %986 = vxpose.xlu0.b32.cont [11/16] 0.0, 128
      %987 = vxpose.xlu0.b32.cont [12/16] 0.0, 128
      %988 = vxpose.xlu0.b32.cont [13/16] 0.0, 128
      %989 = vxpose.xlu0.b32.cont [14/16] 0.0, 128
      %990 = vxpose.xlu0.b32.cont [15/16] 0.0, 128
      %991 = vxpose.xlu0.b32.end [16/16] 0.0, 128
      %v992 = vpop.trf.xlu0
      %v993 = vpop.trf.xlu0
      %v994 = vpop.trf.xlu0
      %v995 = vpop.trf.xlu0
      %v996 = vpop.trf.xlu0
      %v997 = vpop.trf.xlu0
      %v998 = vpop.trf.xlu0
      %v999 = vpop.trf.xlu0
      %v1000 = vpop.trf.xlu0
      %v1001 = vpop.trf.xlu0
      %v1002 = vpop.trf.xlu0
      %v1003 = vpop.trf.xlu0
      %v1004 = vpop.trf.xlu0
      %v1005 = vpop.trf.xlu0
      %v1006 = vpop.trf.xlu0
      %v1007 = vpop.trf.xlu0
      %vm1008 = vcmask 130048
      %1009 = vst.msk [vmem:[%s487] sm:$0xff] %vm1008, %v992
      %1010 = vst.msk [vmem:[%s487 + $0x8] sm:$0xff] %vm1008, %v993
      %1011 = vst.msk [vmem:[%s487 + $0x10] sm:$0xff] %vm1008, %v994
      %1012 = vst.msk [vmem:[%s487 + $0x18] sm:$0xff] %vm1008, %v995
      %1013 = vst.msk [vmem:[%s487 + $0x20] sm:$0xff] %vm1008, %v996
      %1014 = vst.msk [vmem:[%s487 + $0x28] sm:$0xff] %vm1008, %v997
      %1015 = vst.msk [vmem:[%s487 + $0x30] sm:$0xff] %vm1008, %v998
      %1016 = vst.msk [vmem:[%s487 + $0x38] sm:$0xff] %vm1008, %v999
      %1017 = vst.msk [vmem:[%s487 + $0x40] sm:$0xff] %vm1008, %v1000
      %1018 = vst.msk [vmem:[%s487 + $0x48] sm:$0xff] %vm1008, %v1001
      %1019 = vst.msk [vmem:[%s487 + $0x50] sm:$0xff] %vm1008, %v1002
      %1020 = vst.msk [vmem:[%s487 + $0x58] sm:$0xff] %vm1008, %v1003
      %1021 = vst.msk [vmem:[%s487 + $0x60] sm:$0xff] %vm1008, %v1004
      %1022 = vst.msk [vmem:[%s487 + $0x68] sm:$0xff] %vm1008, %v1005
      %1023 = vst.msk [vmem:[%s487 + $0x70] sm:$0xff] %vm1008, %v1006
      %1024 = vst.msk [vmem:[%s487 + $0x78] sm:$0xff] %vm1008, %v1007
      %p1025 = scmp.lt.s32.totalorder %s25, 1
      %s1026 = scalar_select %p1025, %s25, 1
      %s1027 = smul.addr %s1026, 16
      %s1028 = smul.addr %s1027, 8
      %s1029 = scalar_lea.vmem %s14, %s1028
      // Predicated region
      $region77: #{tpu_custom_call.1} parent=75 // pred_check
        %p1030 = pneg %p347
      $region78: #{tpu_custom_call.1} parent=75 // pred_check_branch
        %1032 = sbr.rel (%p1030) target = $region80
      $region79: #{tpu_custom_call.1} parent=75 // pred_region
        _
      $region80: #{tpu_custom_call.1} parent=75 // pred_fallthru
        _
    $region76: #{tpu_custom_call.1} parent=5 // pred_fallthru
      _
    %p1033 = scmp.le.s32.totalorder 2, %s20
    // Predicated region
    $region81: #{tpu_custom_call.1} parent=5 // pred_check
      %p1034 = pneg %p1033
    $region82: #{tpu_custom_call.1} parent=5 // pred_check_branch
      %1036 = sbr.rel (%p1034) target = $region84
    $region83: #{tpu_custom_call.1} parent=5 // pred_region
      %s1037 = ssub.s32 %s20, 2
      // Predicated region
      $region85: #{tpu_custom_call.1} parent=83 // pred_check
        %p1038 = pneg %p353
      $region86: #{tpu_custom_call.1} parent=83 // pred_check_branch
        %1040 = sbr.rel (%p1038) target = $region88
      $region87: #{tpu_custom_call.1} parent=83 // pred_region
        %p1041 = scmp.lt.s32.totalorder %s26, 1
        %s1042 = scalar_select %p1041, %s26, 1
        %s1043 = smul.addr %s1042, 16
        %s1044 = smul.addr %s1043, 8
        %s1045 = scalar_lea.vmem %s14, %s1044
      $region88: #{tpu_custom_call.1} parent=83 // pred_fallthru
        _
    $region84: #{tpu_custom_call.1} parent=5 // pred_fallthru
      _
  $region6: #{tpu_custom_call.1} parent=0 // loop_footer
    %s24 = sadd.s32 1, %s20
  $region7: #{tpu_custom_call.1} parent=0 // loop_footer_branch
    %19 = sbr.rel target = $region3
  $region8: #{tpu_custom_call.1} parent=0 // loop_exit
    _

</llo_original>
